<compile_context>
chip_gen: v7x
topology: tpu7x:2x2x1
jax: 0.10.0
libtpu: 0.0.40
codegen_flags: <defaults>
</compile_context>

<pallas_src>
import jax
import jax.numpy as jnp
from jax.experimental import pallas as pl
from jax.experimental.pallas import tpu as pltpu

OBS_SIZE = 3          # observation_size
HIDDEN = 32           # config PPO.num_cells
DEPTH = 2             # config PPO.depth
N_OBJECTIVES = 8

_LANE = 128           # lane width: batch tile must be a multiple of this
_MAX_TB = 16384       # default batch tile along the lane axis (sweep 8K-32K)


def _value_mlp_kernel(r_ref, t_ref, s_ref,
                      w1t_ref, b1_ref, w2t_ref, b2_ref, wvt_ref, bv_ref,
                      out_ref):
    """Transposed layout: batch on the lane (last) axis.

    r/t/s : (1, TB)  per-field observation streams (f32 or int; cast here)
    w1t   : (H, 3)   layer-1 weight, feature-major; columns drive rank-1 FMAs
    b1    : (H, 1)
    w2t   : (H, H)   layer-2 weight, feature-major (== W2.T)
    b2    : (H, 1)
    wvt   : (O, H)   value-head weight, feature-major (== Wv.T)
    bv    : (O, 1)
    out   : (O, TB)  lane-dense output tile
    """
    # Dtype conversion of integer fields happens here on the VPU (free filler)
    # instead of as separate XLA passes in the wrapper.
    r = r_ref[...].astype(jnp.float32)
    t = t_ref[...].astype(jnp.float32)
    s = s_ref[...].astype(jnp.float32)

    w1t = w1t_ref[...]
    # Layer 1 as three broadcast FMAs: (H,1)*(1,TB) -> (H,TB).  Kept on the VPU
    # (a K=3 matmul wastes the MXU); move to a staged (8,TB) MXU matmul only if
    # a bundle dump shows VALU as the saturated slot.  tanh goes to the EUP slot.
    h = jnp.tanh(
        w1t[:, 0:1] * r
        + w1t[:, 1:2] * t
        + w1t[:, 2:3] * s
        + b1_ref[...]
    )
    # Layer 2: (H,H) @ (H,TB) on the MXU — batch fills the free dimension.
    h = jnp.tanh(
        jnp.dot(w2t_ref[...], h, preferred_element_type=jnp.float32)
        + b2_ref[...]
    )
    # Value head: (O,H) @ (H,TB) -> lane-dense (O,TB) store.
    out_ref[...] = (
        jnp.dot(wvt_ref[...], h, preferred_element_type=jnp.float32)
        + bv_ref[...]
    ).astype(out_ref.dtype)


def _as_stream(x):
    """Torch semantics: each field is one obs column.  Returns (1, B).

    1-D inputs are used as-is (torch unsqueezes to (B,1)); 2-D inputs must be
    exactly (B, 1) — anything wider would also break torch's Linear(3, H).
    Integer / bool fields are normalized to int32 and cast to f32 *inside* the
    kernel; float fields are normalized to f32.
    """
    x = jnp.asarray(x)
    if x.ndim == 2:
        if x.shape[-1] != 1:
            raise ValueError(f"expected a (B,) or (B, 1) field, got {x.shape}")
        x = x[:, 0]
    elif x.ndim != 1:
        raise ValueError(f"expected a (B,) or (B, 1) field, got {x.shape}")
    if jnp.issubdtype(x.dtype, jnp.floating):
        x = x.astype(jnp.float32) if x.dtype != jnp.float32 else x
    else:
        x = x.astype(jnp.int32) if x.dtype != jnp.int32 else x
    return x.reshape(1, -1)                      # (1, B)


def _reference(refactoring, refactoring_type, success, params):
    """Plain-JAX forward (also the small-batch fast path — XLA fuses this)."""
    obs = jnp.concatenate(
        [_as_stream(x).T.astype(jnp.float32)
         for x in (refactoring, refactoring_type, success)],
        axis=-1)                                  # (B, 3)
    w1, b1, w2, b2, wv, bv = params
    h = jnp.tanh(obs @ w1 + b1)
    h = jnp.tanh(h @ w2 + b2)
    return h @ wv + bv


def refactoring_value_network_pallas(refactoring, refactoring_type, success,
                                     params, *, tile_b=_MAX_TB,
                                     lane_major=False):
    """Pallas forward pass: batch on the lane axis, tiled & pipelined.

    lane_major=False returns the torch layout (B, n_objectives); lane_major=True
    returns the kernel-native lane-dense (n_objectives, B) and skips the final
    XLA transpose pass entirely.
    """
    r = _as_stream(refactoring)
    t = _as_stream(refactoring_type)
    s = _as_stream(success)
    batch = r.shape[1]

    w1, b1, w2, b2, wv, bv = params
    # Feature-major (transposed) weights so the kernel computes W^T @ x.
    w1t = jnp.asarray(w1, jnp.float32).T            # (H, 3)
    w2t = jnp.asarray(w2, jnp.float32).T            # (H, H)
    wvt = jnp.asarray(wv, jnp.float32).T            # (O, H)
    b1t = jnp.asarray(b1, jnp.float32).reshape(-1, 1)   # (H, 1)
    b2t = jnp.asarray(b2, jnp.float32).reshape(-1, 1)   # (H, 1)
    bvt = jnp.asarray(bv, jnp.float32).reshape(-1, 1)   # (O, 1)

    # Batch tile: multiple of 128, as large as tile_b, no larger than the batch,
    # and capped so the grid keeps >= 2 steps when possible (both v7x TCs busy).
    n_lane_blocks = pl.cdiv(batch, _LANE)
    tb = min(tile_b, n_lane_blocks * _LANE)
    if n_lane_blocks >= 2:
        tb = min(tb, pl.cdiv(n_lane_blocks, 2) * _LANE)
    tb = max(tb, _LANE)
    grid = (pl.cdiv(batch, tb),)     # ragged last block handled by Pallas

    stream = pl.BlockSpec((1, tb), lambda i: (0, i))
    resident = lambda shape: pl.BlockSpec(shape, lambda i: (0, 0))  # VMEM-resident

    cost = pl.CostEstimate(
        flops=2 * batch * (OBS_SIZE * HIDDEN + HIDDEN * HIDDEN
                           + HIDDEN * N_OBJECTIVES),
        transcendentals=DEPTH * HIDDEN * batch,
        bytes_accessed=(3 * 4 + N_OBJECTIVES * 4) * batch,
    )

    out_t = pl.pallas_call(
        _value_mlp_kernel,
        out_shape=jax.ShapeDtypeStruct((N_OBJECTIVES, batch), jnp.float32),
        grid=grid,
        in_specs=[
            stream, stream, stream,
            resident(w1t.shape), resident(b1t.shape),
            resident(w2t.shape), resident(b2t.shape),
            resident(wvt.shape), resident(bvt.shape),
        ],
        out_specs=pl.BlockSpec((N_OBJECTIVES, tb), lambda i: (0, i)),
        compiler_params=pltpu.CompilerParams(
            dimension_semantics=("parallel",),        # shard batch across TCs
            vmem_limit_bytes=32 * 1024 * 1024),
        cost_estimate=cost,
    )(r, t, s, w1t, b1t, w2t, b2t, wvt, bvt)

    if lane_major:
        return out_t                     # (O, B) lane-dense, no extra HBM pass
    # Torch layout (B, O): one XLA transpose pass (see TODO(synk) above).
    return out_t.T


def refactoring_value_network(refactoring, refactoring_type, success, params,
                              *, min_pallas_batch=4096):
    """Dispatch: at tiny batch the pallas_call fixed cost dominates (<10K FLOPs),
    so let XLA fuse the 3-layer MLP; use the Pallas path for large batches."""
    batch = _as_stream(refactoring).shape[1]
    if batch < min_pallas_batch:
        return _reference(refactoring, refactoring_type, success, params)
    return refactoring_value_network_pallas(
        refactoring, refactoring_type, success, params)


def init_params(key):
    """Deterministic init mimicking torch.nn.Linear default (U[-1/sqrt(fan_in), +])."""
    def linear(k, fan_in, fan_out):
        kw, kb = jax.random.split(k)
        bound = 1.0 / jnp.sqrt(jnp.float32(fan_in))
        w = jax.random.uniform(kw, (fan_in, fan_out), jnp.float32, -bound, bound)
        b = jax.random.uniform(kb, (1, fan_out), jnp.float32, -bound, bound)
        return w, b

    k1, k2, k3 = jax.random.split(key, 3)
    w1, b1 = linear(k1, OBS_SIZE, HIDDEN)
    w2, b2 = linear(k2, HIDDEN, HIDDEN)
    wv, bv = linear(k3, HIDDEN, N_OBJECTIVES)
    return (w1, b1, w2, b2, wv, bv)


if __name__ == "__main__":
    key = jax.random.PRNGKey(0)
    kp, kr, kt, ks = jax.random.split(key, 4)

    params = init_params(kp)

    # Small shapes, but enough batch to exercise a 2-step grid and a ragged
    # final block (batch=200 -> tb=128, grid=(2,), last tile 72 valid lanes).
    batch = 200
    refactoring = jax.random.normal(kr, (batch, 1), jnp.float32)       # (B, 1) path
    refactoring_type = jax.random.randint(kt, (batch,), 0, 10).astype(jnp.int32)
    success = jax.random.bernoulli(ks, 0.5, (batch,)).astype(jnp.int32)

    # Run the Pallas kernel explicitly (the dispatcher would use plain XLA at B=200).
    values = refactoring_value_network_pallas(
        refactoring, refactoring_type, success, params)
    values = jax.block_until_ready(values)

    ref = _reference(refactoring, refactoring_type, success, params)
    assert values.shape == (batch, N_OBJECTIVES)
    assert jnp.allclose(values, ref, atol=1e-5), "mismatch vs reference"

    # Lane-dense path (no wrapper transpose) must agree as well.
    values_lane = refactoring_value_network_pallas(
        refactoring, refactoring_type, success, params, lane_major=True)
    values_lane = jax.block_until_ready(values_lane)
    assert values_lane.shape == (N_OBJECTIVES, batch)
    assert jnp.allclose(values_lane.T, ref, atol=1e-5), "lane-major mismatch"

    print("KERNEL_OK")
</pallas_src>

<mosaic_0001>
module attributes {stable_mosaic.version = 11 : i64} {
  func.func @_value_mlp_kernel(%arg0: i32, %arg1: memref<1x128xf32, #tpu.memory_space<vmem>>, %arg2: memref<1x128xi32, #tpu.memory_space<vmem>>, %arg3: memref<1x128xi32, #tpu.memory_space<vmem>>, %arg4: memref<32x3xf32, #tpu.memory_space<vmem>>, %arg5: memref<32x1xf32, #tpu.memory_space<vmem>>, %arg6: memref<32x32xf32, #tpu.memory_space<vmem>>, %arg7: memref<32x1xf32, #tpu.memory_space<vmem>>, %arg8: memref<8x32xf32, #tpu.memory_space<vmem>>, %arg9: memref<8x1xf32, #tpu.memory_space<vmem>>, %arg10: memref<8x128xf32, #tpu.memory_space<vmem>>) attributes {dimension_semantics = [#tpu.dimension_semantics<parallel>], iteration_bounds = array<i64: 2>, scalar_prefetch = 0 : i64, scratch_operands = 0 : i64, tpu.core_type = #tpu.core_type<tc>, window_params = [{transform_indices = @transform_0, window_bounds = array<i64: 1, 128>}, {transform_indices = @transform_1, window_bounds = array<i64: 1, 128>}, {transform_indices = @transform_2, window_bounds = array<i64: 1, 128>}, {pipeline_mode = #tpu.pipeline_mode<synchronous>, transform_indices = @transform_3, window_bounds = array<i64: 32, 3>}, {pipeline_mode = #tpu.pipeline_mode<synchronous>, transform_indices = @transform_4, window_bounds = array<i64: 32, 1>}, {pipeline_mode = #tpu.pipeline_mode<synchronous>, transform_indices = @transform_5, window_bounds = array<i64: 32, 32>}, {pipeline_mode = #tpu.pipeline_mode<synchronous>, transform_indices = @transform_6, window_bounds = array<i64: 32, 1>}, {pipeline_mode = #tpu.pipeline_mode<synchronous>, transform_indices = @transform_7, window_bounds = array<i64: 8, 32>}, {pipeline_mode = #tpu.pipeline_mode<synchronous>, transform_indices = @transform_8, window_bounds = array<i64: 8, 1>}, {transform_indices = @transform_9, window_bounds = array<i64: 8, 128>}]} {
    %c0 = arith.constant 0 : index
    %c0_0 = arith.constant 0 : index
    %0 = vector.load %arg1[%c0, %c0_0] : memref<1x128xf32, #tpu.memory_space<vmem>>, vector<1x128xf32>
    %c0_1 = arith.constant 0 : index
    %c0_2 = arith.constant 0 : index
    %1 = vector.load %arg2[%c0_1, %c0_2] : memref<1x128xi32, #tpu.memory_space<vmem>>, vector<1x128xi32>
    %2 = arith.sitofp %1 : vector<1x128xi32> to vector<1x128xf32>
    %c0_3 = arith.constant 0 : index
    %c0_4 = arith.constant 0 : index
    %3 = vector.load %arg3[%c0_3, %c0_4] : memref<1x128xi32, #tpu.memory_space<vmem>>, vector<1x128xi32>
    %4 = arith.sitofp %3 : vector<1x128xi32> to vector<1x128xf32>
    %c0_5 = arith.constant 0 : index
    %c0_6 = arith.constant 0 : index
    %5 = vector.load %arg4[%c0_5, %c0_6] : memref<32x3xf32, #tpu.memory_space<vmem>>, vector<32x3xf32>
    %6 = vector.extract_strided_slice %5 {offsets = [0, 0], sizes = [32, 1], strides = [1, 1]} : vector<32x3xf32> to vector<32x1xf32>
    %7 = vector.broadcast %6 : vector<32x1xf32> to vector<32x128xf32>
    %8 = vector.broadcast %0 : vector<1x128xf32> to vector<32x128xf32>
    %9 = arith.mulf %7, %8 : vector<32x128xf32>
    %10 = vector.extract_strided_slice %5 {offsets = [0, 1], sizes = [32, 1], strides = [1, 1]} : vector<32x3xf32> to vector<32x1xf32>
    %11 = vector.broadcast %10 : vector<32x1xf32> to vector<32x128xf32>
    %12 = vector.broadcast %2 : vector<1x128xf32> to vector<32x128xf32>
    %13 = arith.mulf %11, %12 : vector<32x128xf32>
    %14 = arith.addf %9, %13 : vector<32x128xf32>
    %15 = vector.extract_strided_slice %5 {offsets = [0, 2], sizes = [32, 1], strides = [1, 1]} : vector<32x3xf32> to vector<32x1xf32>
    %16 = vector.broadcast %15 : vector<32x1xf32> to vector<32x128xf32>
    %17 = vector.broadcast %4 : vector<1x128xf32> to vector<32x128xf32>
    %18 = arith.mulf %16, %17 : vector<32x128xf32>
    %19 = arith.addf %14, %18 : vector<32x128xf32>
    %c0_7 = arith.constant 0 : index
    %c0_8 = arith.constant 0 : index
    %20 = vector.load %arg5[%c0_7, %c0_8] : memref<32x1xf32, #tpu.memory_space<vmem>>, vector<32x1xf32>
    %21 = vector.broadcast %20 : vector<32x1xf32> to vector<32x128xf32>
    %22 = arith.addf %19, %21 : vector<32x128xf32>
    %23 = math.tanh %22 : vector<32x128xf32>
    %c0_9 = arith.constant 0 : index
    %c0_10 = arith.constant 0 : index
    %24 = vector.load %arg6[%c0_9, %c0_10] : memref<32x32xf32, #tpu.memory_space<vmem>>, vector<32x32xf32>
    %cst = arith.constant dense<0.000000e+00> : vector<32x128xf32>
    %25 = tpu.matmul %24, %23, %cst {dimension_numbers = #tpu.dot_dimension_numbers<[1], [0], [0], [1], [0, 0, 1, 1], [], []>} : vector<32x32xf32>, vector<32x128xf32>, vector<32x128xf32> -> vector<32x128xf32>
    %c0_11 = arith.constant 0 : index
    %c0_12 = arith.constant 0 : index
    %26 = vector.load %arg7[%c0_11, %c0_12] : memref<32x1xf32, #tpu.memory_space<vmem>>, vector<32x1xf32>
    %27 = vector.broadcast %26 : vector<32x1xf32> to vector<32x128xf32>
    %28 = arith.addf %25, %27 : vector<32x128xf32>
    %29 = math.tanh %28 : vector<32x128xf32>
    %c0_13 = arith.constant 0 : index
    %c0_14 = arith.constant 0 : index
    %30 = vector.load %arg8[%c0_13, %c0_14] : memref<8x32xf32, #tpu.memory_space<vmem>>, vector<8x32xf32>
    %cst_15 = arith.constant dense<0.000000e+00> : vector<8x128xf32>
    %31 = tpu.matmul %30, %29, %cst_15 {dimension_numbers = #tpu.dot_dimension_numbers<[1], [0], [0], [1], [0, 0, 1, 1], [], []>} : vector<8x32xf32>, vector<32x128xf32>, vector<8x128xf32> -> vector<8x128xf32>
    %c0_16 = arith.constant 0 : index
    %c0_17 = arith.constant 0 : index
    %32 = vector.load %arg9[%c0_16, %c0_17] : memref<8x1xf32, #tpu.memory_space<vmem>>, vector<8x1xf32>
    %33 = vector.broadcast %32 : vector<8x1xf32> to vector<8x128xf32>
    %34 = arith.addf %31, %33 : vector<8x128xf32>
    %c0_18 = arith.constant 0 : index
    %c0_19 = arith.constant 0 : index
    %35 = vector.load %arg10[%c0_18, %c0_19] : memref<8x128xf32, #tpu.memory_space<vmem>>, vector<8x128xf32>
    tpu.vector_store %arg10[%c0_18, %c0_19], %34 {strides = array<i32>} : memref<8x128xf32, #tpu.memory_space<vmem>>, vector<8x128xf32>,
    return
  }
  func.func @transform_0(%arg0: i32) -> (i32, i32) {
    %c0_i32 = arith.constant 0 : i32
    %c0_i32_0 = arith.constant 0 : i32
    return %c0_i32, %arg0 : i32, i32
  }
  func.func @transform_1(%arg0: i32) -> (i32, i32) {
    %c0_i32 = arith.constant 0 : i32
    %c0_i32_0 = arith.constant 0 : i32
    return %c0_i32, %arg0 : i32, i32
  }
  func.func @transform_2(%arg0: i32) -> (i32, i32) {
    %c0_i32 = arith.constant 0 : i32
    %c0_i32_0 = arith.constant 0 : i32
    return %c0_i32, %arg0 : i32, i32
  }
  func.func @transform_3(%arg0: i32) -> (i32, i32) {
    %c0_i32 = arith.constant 0 : i32
    %c0_i32_0 = arith.constant 0 : i32
    %c0_i32_1 = arith.constant 0 : i32
    return %c0_i32, %c0_i32_0 : i32, i32
  }
  func.func @transform_4(%arg0: i32) -> (i32, i32) {
    %c0_i32 = arith.constant 0 : i32
    %c0_i32_0 = arith.constant 0 : i32
    %c0_i32_1 = arith.constant 0 : i32
    return %c0_i32, %c0_i32_0 : i32, i32
  }
  func.func @transform_5(%arg0: i32) -> (i32, i32) {
    %c0_i32 = arith.constant 0 : i32
    %c0_i32_0 = arith.constant 0 : i32
    %c0_i32_1 = arith.constant 0 : i32
    return %c0_i32, %c0_i32_0 : i32, i32
  }
  func.func @transform_6(%arg0: i32) -> (i32, i32) {
    %c0_i32 = arith.constant 0 : i32
    %c0_i32_0 = arith.constant 0 : i32
    %c0_i32_1 = arith.constant 0 : i32
    return %c0_i32, %c0_i32_0 : i32, i32
  }
  func.func @transform_7(%arg0: i32) -> (i32, i32) {
    %c0_i32 = arith.constant 0 : i32
    %c0_i32_0 = arith.constant 0 : i32
    %c0_i32_1 = arith.constant 0 : i32
    return %c0_i32, %c0_i32_0 : i32, i32
  }
  func.func @transform_8(%arg0: i32) -> (i32, i32) {
    %c0_i32 = arith.constant 0 : i32
    %c0_i32_0 = arith.constant 0 : i32
    %c0_i32_1 = arith.constant 0 : i32
    return %c0_i32, %c0_i32_0 : i32, i32
  }
  func.func @transform_9(%arg0: i32) -> (i32, i32) {
    %c0_i32 = arith.constant 0 : i32
    %c0_i32_0 = arith.constant 0 : i32
    return %c0_i32, %arg0 : i32, i32
  }
}

</mosaic_0001>

<llo_original>
// kernel: tpu_custom_call.1
$region0: #{tpu_custom_call.1}
  #allocation0 [shape = 'u32[]', space=smem, size = 0x4, offset = 0x4, fixed_abs, tag = 'smem constant byte address 0x4 - core index']
  #allocation1 [shape = 'u32[144,128]{1,0:T(1,128)}', space=vmem, size = 0x12000, scoped, tag = 'internal scratch']
  %s0 = inlined_call_operand.vmem [shape: f32[1,200], index: 0, kind: input, shape index: {}]
  %s1 = inlined_call_operand.vmem [shape: s32[1,200], index: 1, kind: input, shape index: {}]
  %s2 = inlined_call_operand.vmem [shape: s32[1,200], index: 2, kind: input, shape index: {}]
  %s3 = inlined_call_operand.vmem [shape: f32[32,3], index: 3, kind: input, shape index: {}]
  %s4 = inlined_call_operand.vmem [shape: f32[32,1], index: 4, kind: input, shape index: {}]
  %s5 = inlined_call_operand.vmem [shape: f32[32,32], index: 5, kind: input, shape index: {}]
  %s6 = inlined_call_operand.vmem [shape: f32[32,1], index: 6, kind: input, shape index: {}]
  %s7 = inlined_call_operand.vmem [shape: f32[8,32], index: 7, kind: input, shape index: {}]
  %s8 = inlined_call_operand.vmem [shape: f32[8,1], index: 8, kind: input, shape index: {}]
  %s9 = inlined_call_operand.hbm [shape: f32[8,200], index: 9, kind: output, shape index: {}]
  %s10 = sld [smem:[#allocation0]]
  $region69: #{tpu_custom_call.1} parent=0
    _
  %s12 = ssub.s32 1, %s10
  %s13 = scalar_select 0, %s12, %s10
  $region1: #{tpu_custom_call.1} parent=0
    #allocation2 [shape = 'u8[8192]{0}', space=vmem, size = 0x2000, scoped, tag = 'output window, operand 0']
    #allocation3 [shape = 's32[2]{0}', space=sflag, size = 0x8, scoped, tag = 'scoped memory for tpu_custom_call.1']
    %14 = vsyncpa [#allocation3], 0
    %s15 = scalar_lea.sflag [#allocation3], 1
    %16 = vsyncpa %s15, 0
    loop: start=0, step=1, limit=4
    $region2: #{tpu_custom_call.1} parent=1 // loop_pre_header
      _
    $region3: #{tpu_custom_call.1} parent=1 // loop_header
      %s18 = sphi 0, %s22
      %p19 = scmp.ge.s32.totalorder %s18, 4
      %s28 = sphi 0, %s30
      %s31 = sphi 0, %s28
      %s32 = sphi 0, %s31
      %s48 = sphi 0, %s32
      %s54 = sphi 0, %s56
      %s57 = sphi 0, %s54
      %s58 = sphi 0, %s57
      %s74 = sphi 0, %s58
      %s80 = sphi 0, %s82
      %s83 = sphi 0, %s80
      %s84 = sphi 0, %s83
      %s100 = sphi 0, %s84
      %s104 = sphi 0, %s104
      %s106 = sphi 0, %s104
      %s107 = sphi 0, %s106
      %s121 = sphi 0, %s107
      %s125 = sphi 0, %s125
      %s127 = sphi 0, %s125
      %s128 = sphi 0, %s127
      %s142 = sphi 0, %s128
      %s146 = sphi 0, %s146
      %s148 = sphi 0, %s146
      %s149 = sphi 0, %s148
      %s163 = sphi 0, %s149
      %s167 = sphi 0, %s167
      %s169 = sphi 0, %s167
      %s170 = sphi 0, %s169
      %s184 = sphi 0, %s170
      %s188 = sphi 0, %s188
      %s190 = sphi 0, %s188
      %s191 = sphi 0, %s190
      %s205 = sphi 0, %s191
      %s209 = sphi 0, %s209
      %s211 = sphi 0, %s209
      %s212 = sphi 0, %s211
      %s226 = sphi 0, %s212
      %s232 = sphi 0, %s234
      %s235 = sphi 0, %s232
      %s236 = sphi 0, %s235
      %s252 = sphi 0, %s236
    $region4: #{tpu_custom_call.1} parent=1 // loop_header_branch
      %21 = sbr.rel (%p19) target = $region8
    $region5: #{tpu_custom_call.1} parent=1 // loop_body
      %s23 = ssub.s32 %s18, 1
      %s24 = ssub.s32 %s18, 2
      %s25 = sadd.s32 %s18, 1
      %s26 = ssub.s32 %s18, %s25
      %p27 = scmp.eq.s32.totalorder %s26, 0
      %s29 = sadd.s32 %s28, 1
      %s30 = scalar_select %p27, %s28, %s29
      %p33 = pneg %p27
      %p34 = scmp.eq.s32.totalorder %s18, 1
      %p35 = por %p33, %p34
      %p36 = scmp.ne.s32.totalorder %s28, %s31
      %p37 = scmp.eq.s32.totalorder %s18, 0
      %p38 = por %p36, %p37
      %p39 = scmp.ne.s32.totalorder %s28, %s31
      %p40 = scmp.eq.s32.totalorder %s23, 1
      %p41 = por %p39, %p40
      %p42 = scmp.ne.s32.totalorder %s31, %s32
      %p43 = scmp.eq.s32.totalorder %s23, 0
      %p44 = por %p42, %p43
      %p45 = scmp.ne.s32.totalorder %s31, %s32
      %p46 = scmp.eq.s32.totalorder %s24, 1
      %p47 = por %p45, %p46
      %p49 = scmp.ne.s32.totalorder %s32, %s48
      %p50 = scmp.eq.s32.totalorder %s24, 0
      %p51 = por %p49, %p50
      %s52 = ssub.s32 %s18, %s25
      %p53 = scmp.eq.s32.totalorder %s52, 0
      %s55 = sadd.s32 %s54, 1
      %s56 = scalar_select %p53, %s54, %s55
      %p59 = pneg %p53
      %p60 = scmp.eq.s32.totalorder %s18, 1
      %p61 = por %p59, %p60
      %p62 = scmp.ne.s32.totalorder %s54, %s57
      %p63 = scmp.eq.s32.totalorder %s18, 0
      %p64 = por %p62, %p63
      %p65 = scmp.ne.s32.totalorder %s54, %s57
      %p66 = scmp.eq.s32.totalorder %s23, 1
      %p67 = por %p65, %p66
      %p68 = scmp.ne.s32.totalorder %s57, %s58
      %p69 = scmp.eq.s32.totalorder %s23, 0
      %p70 = por %p68, %p69
      %p71 = scmp.ne.s32.totalorder %s57, %s58
      %p72 = scmp.eq.s32.totalorder %s24, 1
      %p73 = por %p71, %p72
      %p75 = scmp.ne.s32.totalorder %s58, %s74
      %p76 = scmp.eq.s32.totalorder %s24, 0
      %p77 = por %p75, %p76
      %s78 = ssub.s32 %s18, %s25
      %p79 = scmp.eq.s32.totalorder %s78, 0
      %s81 = sadd.s32 %s80, 1
      %s82 = scalar_select %p79, %s80, %s81
      %p85 = pneg %p79
      %p86 = scmp.eq.s32.totalorder %s18, 1
      %p87 = por %p85, %p86
      %p88 = scmp.ne.s32.totalorder %s80, %s83
      %p89 = scmp.eq.s32.totalorder %s18, 0
      %p90 = por %p88, %p89
      %p91 = scmp.ne.s32.totalorder %s80, %s83
      %p92 = scmp.eq.s32.totalorder %s23, 1
      %p93 = por %p91, %p92
      %p94 = scmp.ne.s32.totalorder %s83, %s84
      %p95 = scmp.eq.s32.totalorder %s23, 0
      %p96 = por %p94, %p95
      %p97 = scmp.ne.s32.totalorder %s83, %s84
      %p98 = scmp.eq.s32.totalorder %s24, 1
      %p99 = por %p97, %p98
      %p101 = scmp.ne.s32.totalorder %s84, %s100
      %p102 = scmp.eq.s32.totalorder %s24, 0
      %p103 = por %p101, %p102
      %s105 = sadd.s32 %s104, 1
      %p108 = scmp.eq.s32.totalorder %s18, 1
      %p109 = scmp.ne.s32.totalorder %s104, %s106
      %p110 = scmp.eq.s32.totalorder %s18, 0
      %p111 = por %p109, %p110
      %p112 = scmp.ne.s32.totalorder %s104, %s106
      %p113 = scmp.eq.s32.totalorder %s23, 1
      %p114 = por %p112, %p113
      %p115 = scmp.ne.s32.totalorder %s106, %s107
      %p116 = scmp.eq.s32.totalorder %s23, 0
      %p117 = por %p115, %p116
      %p118 = scmp.ne.s32.totalorder %s106, %s107
      %p119 = scmp.eq.s32.totalorder %s24, 1
      %p120 = por %p118, %p119
      %p122 = scmp.ne.s32.totalorder %s107, %s121
      %p123 = scmp.eq.s32.totalorder %s24, 0
      %p124 = por %p122, %p123
      %s126 = sadd.s32 %s125, 1
      %p129 = scmp.eq.s32.totalorder %s18, 1
      %p130 = scmp.ne.s32.totalorder %s125, %s127
      %p131 = scmp.eq.s32.totalorder %s18, 0
      %p132 = por %p130, %p131
      %p133 = scmp.ne.s32.totalorder %s125, %s127
      %p134 = scmp.eq.s32.totalorder %s23, 1
      %p135 = por %p133, %p134
      %p136 = scmp.ne.s32.totalorder %s127, %s128
      %p137 = scmp.eq.s32.totalorder %s23, 0
      %p138 = por %p136, %p137
      %p139 = scmp.ne.s32.totalorder %s127, %s128
      %p140 = scmp.eq.s32.totalorder %s24, 1
      %p141 = por %p139, %p140
      %p143 = scmp.ne.s32.totalorder %s128, %s142
      %p144 = scmp.eq.s32.totalorder %s24, 0
      %p145 = por %p143, %p144
      %s147 = sadd.s32 %s146, 1
      %p150 = scmp.eq.s32.totalorder %s18, 1
      %p151 = scmp.ne.s32.totalorder %s146, %s148
      %p152 = scmp.eq.s32.totalorder %s18, 0
      %p153 = por %p151, %p152
      %p154 = scmp.ne.s32.totalorder %s146, %s148
      %p155 = scmp.eq.s32.totalorder %s23, 1
      %p156 = por %p154, %p155
      %p157 = scmp.ne.s32.totalorder %s148, %s149
      %p158 = scmp.eq.s32.totalorder %s23, 0
      %p159 = por %p157, %p158
      %p160 = scmp.ne.s32.totalorder %s148, %s149
      %p161 = scmp.eq.s32.totalorder %s24, 1
      %p162 = por %p160, %p161
      %p164 = scmp.ne.s32.totalorder %s149, %s163
      %p165 = scmp.eq.s32.totalorder %s24, 0
      %p166 = por %p164, %p165
      %s168 = sadd.s32 %s167, 1
      %p171 = scmp.eq.s32.totalorder %s18, 1
      %p172 = scmp.ne.s32.totalorder %s167, %s169
      %p173 = scmp.eq.s32.totalorder %s18, 0
      %p174 = por %p172, %p173
      %p175 = scmp.ne.s32.totalorder %s167, %s169
      %p176 = scmp.eq.s32.totalorder %s23, 1
      %p177 = por %p175, %p176
      %p178 = scmp.ne.s32.totalorder %s169, %s170
      %p179 = scmp.eq.s32.totalorder %s23, 0
      %p180 = por %p178, %p179
      %p181 = scmp.ne.s32.totalorder %s169, %s170
      %p182 = scmp.eq.s32.totalorder %s24, 1
      %p183 = por %p181, %p182
      %p185 = scmp.ne.s32.totalorder %s170, %s184
      %p186 = scmp.eq.s32.totalorder %s24, 0
      %p187 = por %p185, %p186
      %s189 = sadd.s32 %s188, 1
      %p192 = scmp.eq.s32.totalorder %s18, 1
      %p193 = scmp.ne.s32.totalorder %s188, %s190
      %p194 = scmp.eq.s32.totalorder %s18, 0
      %p195 = por %p193, %p194
      %p196 = scmp.ne.s32.totalorder %s188, %s190
      %p197 = scmp.eq.s32.totalorder %s23, 1
      %p198 = por %p196, %p197
      %p199 = scmp.ne.s32.totalorder %s190, %s191
      %p200 = scmp.eq.s32.totalorder %s23, 0
      %p201 = por %p199, %p200
      %p202 = scmp.ne.s32.totalorder %s190, %s191
      %p203 = scmp.eq.s32.totalorder %s24, 1
      %p204 = por %p202, %p203
      %p206 = scmp.ne.s32.totalorder %s191, %s205
      %p207 = scmp.eq.s32.totalorder %s24, 0
      %p208 = por %p206, %p207
      %s210 = sadd.s32 %s209, 1
      %p213 = scmp.eq.s32.totalorder %s18, 1
      %p214 = scmp.ne.s32.totalorder %s209, %s211
      %p215 = scmp.eq.s32.totalorder %s18, 0
      %p216 = por %p214, %p215
      %p217 = scmp.ne.s32.totalorder %s209, %s211
      %p218 = scmp.eq.s32.totalorder %s23, 1
      %p219 = por %p217, %p218
      %p220 = scmp.ne.s32.totalorder %s211, %s212
      %p221 = scmp.eq.s32.totalorder %s23, 0
      %p222 = por %p220, %p221
      %p223 = scmp.ne.s32.totalorder %s211, %s212
      %p224 = scmp.eq.s32.totalorder %s24, 1
      %p225 = por %p223, %p224
      %p227 = scmp.ne.s32.totalorder %s212, %s226
      %p228 = scmp.eq.s32.totalorder %s24, 0
      %p229 = por %p227, %p228
      %s230 = ssub.s32 %s18, %s25
      %p231 = scmp.eq.s32.totalorder %s230, 0
      %s233 = sadd.s32 %s232, 1
      %s234 = scalar_select %p231, %s232, %s233
      %p237 = pneg %p231
      %p238 = scmp.eq.s32.totalorder %s18, 1
      %p239 = por %p237, %p238
      %p240 = scmp.ne.s32.totalorder %s232, %s235
      %p241 = scmp.eq.s32.totalorder %s18, 0
      %p242 = por %p240, %p241
      %p243 = scmp.ne.s32.totalorder %s232, %s235
      %p244 = scmp.eq.s32.totalorder %s23, 1
      %p245 = por %p243, %p244
      %p246 = scmp.ne.s32.totalorder %s235, %s236
      %p247 = scmp.eq.s32.totalorder %s23, 0
      %p248 = por %p246, %p247
      %p249 = scmp.ne.s32.totalorder %s235, %s236
      %p250 = scmp.eq.s32.totalorder %s24, 1
      %p251 = por %p249, %p250
      %p253 = scmp.ne.s32.totalorder %s236, %s252
      %p254 = scmp.eq.s32.totalorder %s24, 0
      %p255 = por %p253, %p254
      %p256 = scmp.le.s32.totalorder 1, %s18
      %p257 = scmp.lt.s32.totalorder %s18, 3
      %p258 = pnand %p256, %p257
      %p259 = pneg %p258
      // Predicated region
      $region9: #{tpu_custom_call.1} parent=5 // pred_check
        _
      $region10: #{tpu_custom_call.1} parent=5 // pred_check_branch
        %261 = sbr.rel (%p258) target = $region12
      $region11: #{tpu_custom_call.1} parent=5 // pred_region
        %s262 = ssub.s32 %s18, 1
        // Predicated region
        $region13: #{tpu_custom_call.1} parent=11 // pred_check
          %p263 = pneg %p117
        $region14: #{tpu_custom_call.1} parent=11 // pred_check_branch
          %265 = sbr.rel (%p263) target = $region16
        $region15: #{tpu_custom_call.1} parent=11 // pred_region
          _
        $region16: #{tpu_custom_call.1} parent=11 // pred_fallthru
          _
        // Predicated region
        $region17: #{tpu_custom_call.1} parent=11 // pred_check
          %p266 = pneg %p138
        $region18: #{tpu_custom_call.1} parent=11 // pred_check_branch
          %268 = sbr.rel (%p266) target = $region20
        $region19: #{tpu_custom_call.1} parent=11 // pred_region
          _
        $region20: #{tpu_custom_call.1} parent=11 // pred_fallthru
          _
        // Predicated region
        $region21: #{tpu_custom_call.1} parent=11 // pred_check
          %p269 = pneg %p159
        $region22: #{tpu_custom_call.1} parent=11 // pred_check_branch
          %271 = sbr.rel (%p269) target = $region24
        $region23: #{tpu_custom_call.1} parent=11 // pred_region
          _
        $region24: #{tpu_custom_call.1} parent=11 // pred_fallthru
          _
        // Predicated region
        $region25: #{tpu_custom_call.1} parent=11 // pred_check
          %p272 = pneg %p180
        $region26: #{tpu_custom_call.1} parent=11 // pred_check_branch
          %274 = sbr.rel (%p272) target = $region28
        $region27: #{tpu_custom_call.1} parent=11 // pred_region
          _
        $region28: #{tpu_custom_call.1} parent=11 // pred_fallthru
          _
        // Predicated region
        $region29: #{tpu_custom_call.1} parent=11 // pred_check
          %p275 = pneg %p201
        $region30: #{tpu_custom_call.1} parent=11 // pred_check_branch
          %277 = sbr.rel (%p275) target = $region32
        $region31: #{tpu_custom_call.1} parent=11 // pred_region
          _
        $region32: #{tpu_custom_call.1} parent=11 // pred_fallthru
          _
        // Predicated region
        $region33: #{tpu_custom_call.1} parent=11 // pred_check
          %p278 = pneg %p222
        $region34: #{tpu_custom_call.1} parent=11 // pred_check_branch
          %280 = sbr.rel (%p278) target = $region36
        $region35: #{tpu_custom_call.1} parent=11 // pred_region
          _
        $region36: #{tpu_custom_call.1} parent=11 // pred_fallthru
          _
      $region12: #{tpu_custom_call.1} parent=5 // pred_fallthru
        _
      %p281 = scmp.lt.s32.totalorder %s18, 2
      // Predicated region
      $region37: #{tpu_custom_call.1} parent=5 // pred_check
        %p282 = pneg %p281
      $region38: #{tpu_custom_call.1} parent=5 // pred_check_branch
        %284 = sbr.rel (%p282) target = $region40
      $region39: #{tpu_custom_call.1} parent=5 // pred_region
        // Predicated region
        $region41: #{tpu_custom_call.1} parent=39 // pred_check
          %p285 = pneg %p38
        $region42: #{tpu_custom_call.1} parent=39 // pred_check_branch
          %287 = sbr.rel (%p285) target = $region44
        $region43: #{tpu_custom_call.1} parent=39 // pred_region
          %p288 = scmp.lt.s32.totalorder %s18, 1
          %s289 = scalar_select %p288, %s18, 1
          %s290 = scalar_lea.vmem %s0, %s289
        $region44: #{tpu_custom_call.1} parent=39 // pred_fallthru
          _
        // Predicated region
        $region45: #{tpu_custom_call.1} parent=39 // pred_check
          %p291 = pneg %p64
        $region46: #{tpu_custom_call.1} parent=39 // pred_check_branch
          %293 = sbr.rel (%p291) target = $region48
        $region47: #{tpu_custom_call.1} parent=39 // pred_region
          %p294 = scmp.lt.s32.totalorder %s18, 1
          %s295 = scalar_select %p294, %s18, 1
          %s296 = scalar_lea.vmem %s1, %s295
        $region48: #{tpu_custom_call.1} parent=39 // pred_fallthru
          _
        // Predicated region
        $region49: #{tpu_custom_call.1} parent=39 // pred_check
          %p297 = pneg %p90
        $region50: #{tpu_custom_call.1} parent=39 // pred_check_branch
          %299 = sbr.rel (%p297) target = $region52
        $region51: #{tpu_custom_call.1} parent=39 // pred_region
          %p300 = scmp.lt.s32.totalorder %s18, 1
          %s301 = scalar_select %p300, %s18, 1
          %s302 = scalar_lea.vmem %s2, %s301
        $region52: #{tpu_custom_call.1} parent=39 // pred_fallthru
          _
      $region40: #{tpu_custom_call.1} parent=5 // pred_fallthru
        _
      %p303 = scmp.le.s32.totalorder 1, %s18
      %p304 = scmp.lt.s32.totalorder %s18, 3
      %p305 = pnand %p303, %p304
      %p306 = pneg %p305
      // Predicated region
      $region53: #{tpu_custom_call.1} parent=5 // pred_check
        _
      $region54: #{tpu_custom_call.1} parent=5 // pred_check_branch
        %308 = sbr.rel (%p305) target = $region56
      $region55: #{tpu_custom_call.1} parent=5 // pred_region
        %s309 = ssub.s32 %s18, 1
        %p310 = scmp.lt.s32.totalorder %s23, 1
        %s311 = scalar_select %p310, %s23, 1
        %s312 = scalar_lea.vmem %s0, %s311
        %p313 = pneg %p44
        %p314 = pneg %p41
        %p315 = scmp.lt.s32.totalorder %s23, 1
        %s316 = scalar_select %p315, %s23, 1
        %s317 = scalar_lea.vmem %s1, %s316
        %p318 = pneg %p70
        %p319 = pneg %p67
        %p320 = scmp.lt.s32.totalorder %s23, 1
        %s321 = scalar_select %p320, %s23, 1
        %s322 = scalar_lea.vmem %s2, %s321
        %p323 = pneg %p96
        %p324 = pneg %p93
        %p325 = pneg %p117
        %p326 = pneg %p114
        %p327 = pneg %p138
        %p328 = pneg %p135
        %p329 = pneg %p159
        %p330 = pneg %p156
        %p331 = pneg %p180
        %p332 = pneg %p177
        %p333 = pneg %p201
        %p334 = pneg %p198
        %p335 = pneg %p222
        %p336 = pneg %p219
        %p337 = pneg %p248
        %p338 = pneg %p245
        %s339 = sand.u32 %s235, 1
        %s340 = scalar_lea.sflag [#allocation3], %s339
        %s341 = sand.u32 %s235, 1
        %s342 = smul.addr %s341, 8
        %s343 = scalar_lea.vmem [#allocation2], %s342
        %p344 = scmp.lt.s32.totalorder %s23, 1
        %s345 = scalar_select %p344, %s23, 1
        %s346 = scalar_lea.vmem %s0, %s345
        %p347 = scmp.lt.s32.totalorder %s23, 1
        %s348 = scalar_select %p347, %s23, 1
        %s349 = scalar_lea.vmem %s1, %s348
        %p350 = scmp.lt.s32.totalorder %s23, 1
        %s351 = scalar_select %p350, %s23, 1
        %s352 = scalar_lea.vmem %s2, %s351
        %v353 = vld [vmem:[%s346] sm:$0x1]
        %v354 = vld [vmem:[%s349] sm:$0x1]
        %v355 = vcvt.s32.f32 %v354
        %v356 = vld [vmem:[%s352] sm:$0x1]
        %v357 = vcvt.s32.f32 %v356
        %v358 = vld [vmem:[%s3] sm:$0xff]
        %v359 = vld [vmem:[%s3 + $0x8] sm:$0xff]
        %v360 = vld [vmem:[%s3 + $0x10] sm:$0xff]
        %v361 = vld [vmem:[%s3 + $0x18] sm:$0xff]
        %363 = vset.pattern.permute.xlu0 0
        %364 = vperm.xlu0 %363, %v358
        %v365 = vpop.permute.xlu0 %364
        %368 = vset.pattern.permute.xlu0 0
        %369 = vperm.xlu0 %368, %v359
        %v370 = vpop.permute.xlu0 %369
        %373 = vset.pattern.permute.xlu0 0
        %374 = vperm.xlu0 %373, %v360
        %v375 = vpop.permute.xlu0 %374
        %378 = vset.pattern.permute.xlu0 0
        %379 = vperm.xlu0 %378, %v361
        %v380 = vpop.permute.xlu0 %379
        %v383 = vlaneseq
        %v384 = vshrl.u32 %v383, 7
        %v385 = vsub.s32 0, %v384
        %v386 = vrot.slane %v353, %v385
        %v388 = vmul.f32 %v365, %v386
        %v389 = vmul.f32 %v370, %v386
        %v390 = vmul.f32 %v375, %v386
        %v391 = vmul.f32 %v380, %v386
        %392 = vset.pattern.permute.xlu0 1
        %393 = vperm.xlu0 %392, %v358
        %v394 = vpop.permute.xlu0 %393
        %396 = vset.pattern.permute.xlu0 1
        %397 = vperm.xlu0 %396, %v359
        %v398 = vpop.permute.xlu0 %397
        %400 = vset.pattern.permute.xlu0 1
        %401 = vperm.xlu0 %400, %v360
        %v402 = vpop.permute.xlu0 %401
        %404 = vset.pattern.permute.xlu0 1
        %405 = vperm.xlu0 %404, %v361
        %v406 = vpop.permute.xlu0 %405
        %v409 = vlaneseq
        %v410 = vshrl.u32 %v409, 7
        %v411 = vsub.s32 0, %v410
        %v412 = vrot.slane %v355, %v411
        %v414 = vmul.f32 %v394, %v412
        %v415 = vmul.f32 %v398, %v412
        %v416 = vmul.f32 %v402, %v412
        %v417 = vmul.f32 %v406, %v412
        %v418 = vadd.f32 %v388, %v414
        %v419 = vadd.f32 %v389, %v415
        %v420 = vadd.f32 %v390, %v416
        %v421 = vadd.f32 %v391, %v417
        %422 = vset.pattern.permute.xlu0 2
        %423 = vperm.xlu0 %422, %v358
        %v424 = vpop.permute.xlu0 %423
        %426 = vset.pattern.permute.xlu0 2
        %427 = vperm.xlu0 %426, %v359
        %v428 = vpop.permute.xlu0 %427
        %430 = vset.pattern.permute.xlu0 2
        %431 = vperm.xlu0 %430, %v360
        %v432 = vpop.permute.xlu0 %431
        %434 = vset.pattern.permute.xlu0 2
        %435 = vperm.xlu0 %434, %v361
        %v436 = vpop.permute.xlu0 %435
        %v439 = vlaneseq
        %v440 = vshrl.u32 %v439, 7
        %v441 = vsub.s32 0, %v440
        %v442 = vrot.slane %v357, %v441
        %v444 = vmul.f32 %v424, %v442
        %v445 = vmul.f32 %v428, %v442
        %v446 = vmul.f32 %v432, %v442
        %v447 = vmul.f32 %v436, %v442
        %v448 = vadd.f32 %v418, %v444
        %v449 = vadd.f32 %v419, %v445
        %v450 = vadd.f32 %v420, %v446
        %v451 = vadd.f32 %v421, %v447
        %v452 = vld [vmem:[%s4] sm:$0xff]
        %v453 = vld [vmem:[%s4 + $0x8] sm:$0xff]
        %v454 = vld [vmem:[%s4 + $0x10] sm:$0xff]
        %v455 = vld [vmem:[%s4 + $0x18] sm:$0xff]
        %457 = vset.pattern.permute.xlu0 0
        %458 = vperm.xlu0 %457, %v452
        %v459 = vpop.permute.xlu0 %458
        %462 = vset.pattern.permute.xlu0 0
        %463 = vperm.xlu0 %462, %v453
        %v464 = vpop.permute.xlu0 %463
        %467 = vset.pattern.permute.xlu0 0
        %468 = vperm.xlu0 %467, %v454
        %v469 = vpop.permute.xlu0 %468
        %472 = vset.pattern.permute.xlu0 0
        %473 = vperm.xlu0 %472, %v455
        %v474 = vpop.permute.xlu0 %473
        %v476 = vadd.f32 %v448, %v459
        %v477 = vadd.f32 %v449, %v464
        %v478 = vadd.f32 %v450, %v469
        %v479 = vadd.f32 %v451, %v474
        %v480 = vtanh.pop %v476
        %v481 = vtanh.pop %v477
        %v482 = vtanh.pop %v478
        %v483 = vtanh.pop %v479
        %v484 = vld [vmem:[%s5] sm:$0xff]
        %v485 = vld [vmem:[%s5 + $0x8] sm:$0xff]
        %v486 = vld [vmem:[%s5 + $0x10] sm:$0xff]
        %v487 = vld [vmem:[%s5 + $0x18] sm:$0xff]
        %v488 = vld [vmem:[%s6] sm:$0xff]
        %v489 = vld [vmem:[%s6 + $0x8] sm:$0xff]
        %v490 = vld [vmem:[%s6 + $0x10] sm:$0xff]
        %v491 = vld [vmem:[%s6 + $0x18] sm:$0xff]
        %493 = vset.pattern.permute.xlu0 0
        %494 = vperm.xlu0 %493, %v488
        %v495 = vpop.permute.xlu0 %494
        %498 = vset.pattern.permute.xlu0 0
        %499 = vperm.xlu0 %498, %v489
        %v500 = vpop.permute.xlu0 %499
        %503 = vset.pattern.permute.xlu0 0
        %504 = vperm.xlu0 %503, %v490
        %v505 = vpop.permute.xlu0 %504
        %508 = vset.pattern.permute.xlu0 0
        %509 = vperm.xlu0 %508, %v491
        %v510 = vpop.permute.xlu0 %509
        %vm512 = vcmask 261120
        %v514 = vsel %vm512, %v484, 0
        %v517 = vsel %vm512, %v485, 0
        %v520 = vsel %vm512, %v486, 0
        %v523 = vsel %vm512, %v487, 0
        %525 = vmatprep.subr.mxu0 0.0
        %526 = vmatpush1.msra.mxu0 %v480
        %527 = vmatprep.subr.mxu0 0.0
        %528 = vmatpush1.msra.mxu0 %v481
        %529 = vmatprep.subr.mxu0 0.0
        %530 = vmatpush1.msra.mxu0 %v482
        %531 = vmatprep.subr.mxu0 0.0
        %532 = vmatpush1.msra.mxu0 %v483
        %533 = vmatprep.subr.mxu0 0.0
        %534 = vmatpush1.msra.mxu0 0.0
        %535 = vmatprep.subr.mxu0 0.0
        %536 = vmatpush1.msra.mxu0 0.0
        %537 = vmatprep.subr.mxu0 0.0
        %538 = vmatpush1.msra.mxu0 0.0
        %539 = vmatprep.subr.mxu0 0.0
        %540 = vmatpush1.msra.mxu0 0.0
        %541 = vmatprep.subr.mxu0 0.0
        %542 = vmatpush1.msra.mxu0 0.0
        %543 = vmatprep.subr.mxu0 0.0
        %544 = vmatpush1.msra.mxu0 0.0
        %545 = vmatprep.subr.mxu0 0.0
        %546 = vmatpush1.msra.mxu0 0.0
        %547 = vmatprep.subr.mxu0 0.0
        %548 = vmatpush1.msra.mxu0 0.0
        %549 = vmatprep.subr.mxu0 0.0
        %550 = vmatpush1.msra.mxu0 0.0
        %551 = vmatprep.subr.mxu0 0.0
        %552 = vmatpush1.msra.mxu0 0.0
        %553 = vmatprep.subr.mxu0 0.0
        %554 = vmatpush1.msra.mxu0 0.0
        %555 = vmatprep.subr.mxu0 0.0
        %556 = vmatpush1.msra.mxu0 0.0
        %557 = vmatprep.subr.mxu0 0.0
        %558 = vmatpush1.msra.mxu0 0.0
        %559 = vmatprep.subr.mxu0 0.0
        %560 = vmatpush1.msra.mxu0 0.0
        %561 = vmatprep.subr.mxu0 0.0
        %562 = vmatpush1.msra.mxu0 0.0
        %563 = vmatprep.subr.mxu0 0.0
        %564 = vmatpush1.msra.mxu0 0.0
        %565 = vmatprep.subr.mxu0 0.0
        %566 = vmatpush1.msra.mxu0 0.0
        %567 = vmatprep.subr.mxu0 0.0
        %568 = vmatpush1.msra.mxu0 0.0
        %569 = vmatprep.subr.mxu0 0.0
        %570 = vmatpush1.msra.mxu0 0.0
        %571 = vmatprep.subr.mxu0 0.0
        %572 = vmatpush1.msra.mxu0 0.0
        %573 = vmatprep.subr.mxu0 0.0
        %574 = vmatpush1.msra.mxu0 0.0
        %575 = vmatprep.subr.mxu0 0.0
        %576 = vmatpush1.msra.mxu0 0.0
        %577 = vmatprep.subr.mxu0 0.0
        %578 = vmatpush1.msra.mxu0 0.0
        %579 = vmatprep.subr.mxu0 0.0
        %580 = vmatpush1.msra.mxu0 0.0
        %581 = vmatprep.subr.mxu0 0.0
        %582 = vmatpush1.msra.mxu0 0.0
        %583 = vmatprep.subr.mxu0 0.0
        %584 = vmatpush1.msra.mxu0 0.0
        %585 = vmatprep.subr.mxu0 0.0
        %586 = vmatpush1.msra.mxu0 0.0
        %587 = vmatprep.subr.mxu0 0.0
        %588 = vmatpush1.msra.mxu0 0.0
        %589 = vmatprep.mubr.f32.mxu0 0.0
        %590 = vmatmul.mubr.f32.gmra.mrb[0].mxu0 %v514
        %v591 = vpop.f32.mrb[0].mxu0
        %v592 = vadd.f32 %v495, %v591
        %v593 = vpop.f32.mrb[0].mxu0
        %594 = vmatprep.mubr.f32.mxu0 0.0
        %595 = vmatmul.mubr.f32.gmra.mrb[0].mxu0 %v517
        %v596 = vpop.f32.mrb[0].mxu0
        %v597 = vadd.f32 %v500, %v596
        %v598 = vpop.f32.mrb[0].mxu0
        %599 = vmatprep.mubr.f32.mxu0 0.0
        %600 = vmatmul.mubr.f32.gmra.mrb[0].mxu0 %v520
        %v601 = vpop.f32.mrb[0].mxu0
        %v602 = vadd.f32 %v505, %v601
        %v603 = vpop.f32.mrb[0].mxu0
        %604 = vmatprep.mubr.f32.mxu0 0.0
        %605 = vmatmul.mubr.f32.gmra.mrb[0].mxu0 %v523
        %v606 = vpop.f32.mrb[0].mxu0
        %v607 = vadd.f32 %v510, %v606
        %v608 = vpop.f32.mrb[0].mxu0
        %609 = vdwg.mxu0
        %v610 = vtanh.pop %v592
        %v611 = vtanh.pop %v597
        %v612 = vtanh.pop %v602
        %v613 = vtanh.pop %v607
        %v614 = vld [vmem:[%s7] sm:$0xff]
        %v615 = vld [vmem:[%s8] sm:$0xff]
        %617 = vset.pattern.permute.xlu0 0
        %618 = vperm.xlu0 %617, %v615
        %v619 = vpop.permute.xlu0 %618
        %v622 = vsel %vm512, %v614, 0
        %624 = vmatprep.subr.mxu0 0.0
        %625 = vmatpush1.msra.mxu0 %v610
        %626 = vmatprep.subr.mxu0 0.0
        %627 = vmatpush1.msra.mxu0 %v611
        %628 = vmatprep.subr.mxu0 0.0
        %629 = vmatpush1.msra.mxu0 %v612
        %630 = vmatprep.subr.mxu0 0.0
        %631 = vmatpush1.msra.mxu0 %v613
        %632 = vmatprep.subr.mxu0 0.0
        %633 = vmatpush1.msra.mxu0 0.0
        %634 = vmatprep.subr.mxu0 0.0
        %635 = vmatpush1.msra.mxu0 0.0
        %636 = vmatprep.subr.mxu0 0.0
        %637 = vmatpush1.msra.mxu0 0.0
        %638 = vmatprep.subr.mxu0 0.0
        %639 = vmatpush1.msra.mxu0 0.0
        %640 = vmatprep.subr.mxu0 0.0
        %641 = vmatpush1.msra.mxu0 0.0
        %642 = vmatprep.subr.mxu0 0.0
        %643 = vmatpush1.msra.mxu0 0.0
        %644 = vmatprep.subr.mxu0 0.0
        %645 = vmatpush1.msra.mxu0 0.0
        %646 = vmatprep.subr.mxu0 0.0
        %647 = vmatpush1.msra.mxu0 0.0
        %648 = vmatprep.subr.mxu0 0.0
        %649 = vmatpush1.msra.mxu0 0.0
        %650 = vmatprep.subr.mxu0 0.0
        %651 = vmatpush1.msra.mxu0 0.0
        %652 = vmatprep.subr.mxu0 0.0
        %653 = vmatpush1.msra.mxu0 0.0
        %654 = vmatprep.subr.mxu0 0.0
        %655 = vmatpush1.msra.mxu0 0.0
        %656 = vmatprep.subr.mxu0 0.0
        %657 = vmatpush1.msra.mxu0 0.0
        %658 = vmatprep.subr.mxu0 0.0
        %659 = vmatpush1.msra.mxu0 0.0
        %660 = vmatprep.subr.mxu0 0.0
        %661 = vmatpush1.msra.mxu0 0.0
        %662 = vmatprep.subr.mxu0 0.0
        %663 = vmatpush1.msra.mxu0 0.0
        %664 = vmatprep.subr.mxu0 0.0
        %665 = vmatpush1.msra.mxu0 0.0
        %666 = vmatprep.subr.mxu0 0.0
        %667 = vmatpush1.msra.mxu0 0.0
        %668 = vmatprep.subr.mxu0 0.0
        %669 = vmatpush1.msra.mxu0 0.0
        %670 = vmatprep.subr.mxu0 0.0
        %671 = vmatpush1.msra.mxu0 0.0
        %672 = vmatprep.subr.mxu0 0.0
        %673 = vmatpush1.msra.mxu0 0.0
        %674 = vmatprep.subr.mxu0 0.0
        %675 = vmatpush1.msra.mxu0 0.0
        %676 = vmatprep.subr.mxu0 0.0
        %677 = vmatpush1.msra.mxu0 0.0
        %678 = vmatprep.subr.mxu0 0.0
        %679 = vmatpush1.msra.mxu0 0.0
        %680 = vmatprep.subr.mxu0 0.0
        %681 = vmatpush1.msra.mxu0 0.0
        %682 = vmatprep.subr.mxu0 0.0
        %683 = vmatpush1.msra.mxu0 0.0
        %684 = vmatprep.subr.mxu0 0.0
        %685 = vmatpush1.msra.mxu0 0.0
        %686 = vmatprep.subr.mxu0 0.0
        %687 = vmatpush1.msra.mxu0 0.0
        %688 = vmatprep.mubr.f32.mxu0 0.0
        %689 = vmatmul.mubr.f32.gmra.mrb[0].mxu0 %v622
        %v690 = vpop.f32.mrb[0].mxu0
        %v691 = vadd.f32 %v619, %v690
        %v692 = vpop.f32.mrb[0].mxu0
        %693 = vdwg.mxu0
        %694 = vst [vmem:[%s343] sm:$0xff] %v691
        %s695 = sand.u32 %s235, 1
        %s696 = scalar_lea.sflag [#allocation3], %s695
        %s697 = sand.u32 %s235, 1
        %s698 = smul.addr %s697, 8
        %s699 = scalar_lea.vmem [#allocation2], %s698
        // Predicated region
        $region57: #{tpu_custom_call.1} parent=55 // pred_check
          %p700 = pneg %p245
        $region58: #{tpu_custom_call.1} parent=55 // pred_check_branch
          %702 = sbr.rel (%p700) target = $region60
        $region59: #{tpu_custom_call.1} parent=55 // pred_region
          %s704 = ssub.s32 128, 128
          %705 = vsyncadd %s696, %s704
          %s706 = smul.addr %s23, 128
          %s707 = scalar_lea.hbm %s9, %s706
          %s709 = sshll.u32 %s699, 4
          %s710 = int_to_ptr.vmem [resolvable:$true] %s709
          %712 = dma.vmem_to_hbm [thread:$0]  %s710, 128, %s707, %s696
        $region60: #{tpu_custom_call.1} parent=55 // pred_fallthru
          _
      $region56: #{tpu_custom_call.1} parent=5 // pred_fallthru
        _
      %p713 = scmp.le.s32.totalorder 2, %s18
      // Predicated region
      $region61: #{tpu_custom_call.1} parent=5 // pred_check
        %p714 = pneg %p713
      $region62: #{tpu_custom_call.1} parent=5 // pred_check_branch
        %716 = sbr.rel (%p714) target = $region64
      $region63: #{tpu_custom_call.1} parent=5 // pred_region
        %s717 = ssub.s32 %s18, 2
        // Predicated region
        $region65: #{tpu_custom_call.1} parent=63 // pred_check
          %p718 = pneg %p251
        $region66: #{tpu_custom_call.1} parent=63 // pred_check_branch
          %720 = sbr.rel (%p718) target = $region68
        $region67: #{tpu_custom_call.1} parent=63 // pred_region
          %s721 = sand.u32 %s236, 1
          %s722 = scalar_lea.sflag [#allocation3], %s721
          %s723 = sand.u32 %s236, 1
          %s724 = smul.addr %s723, 8
          %s725 = scalar_lea.vmem [#allocation2], %s724
          %726 = dma.done %s722, 128
        $region68: #{tpu_custom_call.1} parent=63 // pred_fallthru
          _
      $region64: #{tpu_custom_call.1} parent=5 // pred_fallthru
        _
    $region6: #{tpu_custom_call.1} parent=1 // loop_footer
      %s22 = sadd.s32 1, %s18
    $region7: #{tpu_custom_call.1} parent=1 // loop_footer_branch
      %17 = sbr.rel target = $region3
    $region8: #{tpu_custom_call.1} parent=1 // loop_exit
      _
    %727 = vsyncpa [#allocation3], 1
    %s728 = scalar_lea.sflag [#allocation3], 1
    %729 = vsyncpa %s728, 1

</llo_original>
